<compile_context>
chip_gen: v6e
topology: v6e:2x2x1
jax: 0.10.0
libtpu: 0.0.40
codegen_flags: <defaults>
</compile_context>

<pallas_src>
import math

import jax
import jax.numpy as jnp
from jax.experimental import pallas as pl
from jax.experimental.pallas import tpu as pltpu

_LANE = 128


def _gcn_kernel(adj_ref, x_ref, wt_ref, b_ref, out_ref):
    # adj_ref: (TB, TM, N)   compute dtype (bf16 by default)
    # x_ref:   (TB, N, D_in) compute dtype, resident across the row-tile axis
    # wt_ref:  (D_in, Dp)    compute dtype (pre-transposed, lane-padded weight)
    # b_ref:   (1, Dp)       float32 (lane-padded bias)
    # out_ref: (TB, TM, Dp)  float32
    TB, TM, _ = adj_ref.shape
    Dp = out_ref.shape[-1]

    # adj_X = bmm(adj, X)  -- batched MXU matmul, f32 accumulation.
    adj_x = jnp.einsum(
        "bij,bjk->bik", adj_ref[...], x_ref[...],
        preferred_element_type=jnp.float32)

    # Linear: flatten the (TB, TM) rows into one wide 2-D matmul so the whole
    # tile feeds the MXU in a single pass; feed it in the compute dtype.
    adj_x = adj_x.astype(wt_ref.dtype).reshape(TB * TM, -1)
    y = jnp.dot(adj_x, wt_ref[...], preferred_element_type=jnp.float32)

    # Bias + ReLU epilogue in f32 (v5e VPU has no bf16 path).
    y = jnp.maximum(y + b_ref[...], 0.0)
    out_ref[...] = y.reshape(TB, TM, Dp).astype(out_ref.dtype)


def _divisor_tile(n, target, multiple):
    """Largest divisor of n that is <= target (preferring multiples of `multiple`)."""
    if n <= target:
        return n
    for t in range(target, 0, -1):
        if n % t == 0 and t % multiple == 0:
            return t
    for t in range(target, 0, -1):
        if n % t == 0:
            return t
    return n


def gcn_layer(adj, x, weight, bias, *, compute_dtype=jnp.bfloat16):
    """Pallas implementation of GCN_layer.forward.

    adj:    (B, N, N)
    x:      (B, N, D_in)
    weight: (D_out, D_in)   (PyTorch nn.Linear layout)
    bias:   (D_out,)
    returns (adj, relu(bmm(adj, x) @ weight.T + bias)) with out (B, N, D_out) f32.
    """
    B, N, _ = adj.shape
    D_in = x.shape[-1]
    D_out = weight.shape[0]

    # Lane-dense output: pad the feature dim up to a multiple of 128 so the
    # stores are full-lane vst's (sliced back off after the pallas_call).
    Dp = max(_LANE, ((D_out + _LANE - 1) // _LANE) * _LANE)

    # bf16 operands (HBM-bound on the B*N^2 adj stream); accumulation stays f32.
    adj_c = jnp.asarray(adj, compute_dtype)
    x_c = jnp.asarray(x, compute_dtype)
    wt = jnp.zeros((D_in, Dp), compute_dtype).at[:, :D_out].set(
        jnp.asarray(weight, compute_dtype).T)
    b2 = jnp.zeros((1, Dp), jnp.float32).at[:, :D_out].set(
        jnp.asarray(bias, jnp.float32))

    # Tile sizes:
    #  * TB batches several small graphs per grid step (amortizes ~0.35us/step
    #    overhead when N is tiny).
    #  * TM tiles the node/row axis so the adj buffer is ~TB*TM*N bytes, which
    #    keeps double-buffering alive within v7x's smaller VMEM too.
    TB = _divisor_tile(B, 16 if N <= 256 else 1, 1)
    TM = _divisor_tile(N, 256, 8)

    elt = jnp.dtype(compute_dtype).itemsize
    # Double-buffered VMEM footprint estimate (adj + X + Wt + bias + out).
    vmem_need = 2 * (TB * TM * N * elt + TB * N * D_in * elt
                     + D_in * Dp * elt + Dp * 4 + TB * TM * Dp * 4)
    vmem_limit = int(min(max(2 * vmem_need, 32 * 1024 * 1024),
                         64 * 1024 * 1024))

    flops = 2 * B * N * N * D_in + 2 * B * N * D_in * Dp
    bytes_accessed = (B * N * N * elt + B * N * D_in * elt
                      + D_in * Dp * elt + Dp * 4 + B * N * Dp * 4)

    out = pl.pallas_call(
        _gcn_kernel,
        out_shape=jax.ShapeDtypeStruct((B, N, Dp), jnp.float32),
        grid_spec=pltpu.PrefetchScalarGridSpec(
            num_scalar_prefetch=0,
            grid=(B // TB, N // TM),
            in_specs=[
                # adj row tile: the bandwidth-critical stream.
                pl.BlockSpec((TB, TM, N), lambda b, i: (b, i, 0)),
                # X: resident across the row-tile axis.
                pl.BlockSpec((TB, N, D_in), lambda b, i: (b, 0, 0)),
                # Weight / bias: constant-indexed VMEM residents.
                pl.BlockSpec((D_in, Dp), lambda b, i: (0, 0)),
                pl.BlockSpec((1, Dp), lambda b, i: (0, 0)),
            ],
            out_specs=pl.BlockSpec((TB, TM, Dp), lambda b, i: (b, i, 0)),
        ),
        compiler_params=pltpu.CompilerParams(
            dimension_semantics=("parallel", "parallel"),
            vmem_limit_bytes=vmem_limit,
        ),
        cost_estimate=pl.CostEstimate(
            flops=flops, transcendentals=0, bytes_accessed=bytes_accessed),
    )(adj_c, x_c, wt, b2)

    # TODO(synk): for N >~ 4-8K also tile the contraction axis (grid K dim,
    # VMEM accumulator + pl.when init/finalize); not needed at these sizes.

    # Module returns (adj, adj_X); adj is passed through unchanged.
    return adj, out[..., :D_out]


def _reference(adj, x, weight, bias, compute_dtype):
    # Mirrors the kernel's quantization (bf16 operands, f32 accumulation).
    a = adj.astype(compute_dtype).astype(jnp.float32)
    xx = x.astype(compute_dtype).astype(jnp.float32)
    w = weight.astype(compute_dtype).astype(jnp.float32)
    adj_x = jnp.einsum("bij,bjk->bik", a, xx)
    adj_x = adj_x.astype(compute_dtype).astype(jnp.float32)
    y = adj_x @ w.T + bias
    return jnp.maximum(y, 0.0)


if __name__ == "__main__":
    # Small shapes consistent with the module: batch=2, nodes=16,
    # input_dimension=32, out_dimension=32.
    B, N, D_in, D_out = 2, 16, 32, 32

    key = jax.random.PRNGKey(0)
    k_adj, k_x, k_w, k_b = jax.random.split(key, 4)

    adj = jax.random.uniform(k_adj, (B, N, N), jnp.float32)
    x = jax.random.normal(k_x, (B, N, D_in), jnp.float32)

    # Deterministic nn.Linear-style init: U(-1/sqrt(fan_in), 1/sqrt(fan_in))
    bound = 1.0 / math.sqrt(D_in)
    weight = jax.random.uniform(k_w, (D_out, D_in), jnp.float32,
                                minval=-bound, maxval=bound)
    bias = jax.random.uniform(k_b, (D_out,), jnp.float32,
                              minval=-bound, maxval=bound)

    adj_out, y = gcn_layer(adj, x, weight, bias)
    jax.block_until_ready(y)

    y_ref = _reference(adj, x, weight, bias, jnp.bfloat16)
    assert y.shape == (B, N, D_out), f"bad output shape {y.shape}"
    assert jnp.allclose(y, y_ref, atol=1e-3, rtol=1e-3), "mismatch vs reference"
    assert jnp.array_equal(adj_out, adj), "adj passthrough mismatch"

    print("KERNEL_OK")
</pallas_src>

<mosaic_0001>
module attributes {stable_mosaic.version = 11 : i64} {
  func.func @_gcn_kernel(%arg0: i32, %arg1: i32, %arg2: memref<2x16x16xbf16, #tpu.memory_space<vmem>>, %arg3: memref<2x16x32xbf16, #tpu.memory_space<vmem>>, %arg4: memref<32x128xbf16, #tpu.memory_space<vmem>>, %arg5: memref<1x128xf32, #tpu.memory_space<vmem>>, %arg6: memref<2x16x128xf32, #tpu.memory_space<vmem>>) attributes {dimension_semantics = [#tpu.dimension_semantics<parallel>, #tpu.dimension_semantics<parallel>], iteration_bounds = array<i64: 1, 1>, scalar_prefetch = 0 : i64, scratch_operands = 0 : i64, tpu.core_type = #tpu.core_type<tc>, window_params = [{transform_indices = @transform_0, window_bounds = array<i64: 2, 16, 16>}, {transform_indices = @transform_1, window_bounds = array<i64: 2, 16, 32>}, {pipeline_mode = #tpu.pipeline_mode<synchronous>, transform_indices = @transform_2, window_bounds = array<i64: 32, 128>}, {pipeline_mode = #tpu.pipeline_mode<synchronous>, transform_indices = @transform_3, window_bounds = array<i64: 1, 128>}, {transform_indices = @transform_4, window_bounds = array<i64: 2, 16, 128>}]} {
    %c0 = arith.constant 0 : index
    %c0_0 = arith.constant 0 : index
    %c0_1 = arith.constant 0 : index
    %0 = vector.load %arg2[%c0, %c0_0, %c0_1] : memref<2x16x16xbf16, #tpu.memory_space<vmem>>, vector<2x16x16xbf16>
    %c0_2 = arith.constant 0 : index
    %c0_3 = arith.constant 0 : index
    %c0_4 = arith.constant 0 : index
    %1 = vector.load %arg3[%c0_2, %c0_3, %c0_4] : memref<2x16x32xbf16, #tpu.memory_space<vmem>>, vector<2x16x32xbf16>
    "tpu.trace_start"() <{level = 10 : i32, message = "bij,bjk->bik"}> : () -> ()
    %cst = arith.constant dense<0.000000e+00> : vector<2x16x32xf32>
    %2 = tpu.matmul %0, %1, %cst {dimension_numbers = #tpu.dot_dimension_numbers<[2], [1], [1], [2], [0, 0, 0, 1, 1, 2], [0], [0]>} : vector<2x16x16xbf16>, vector<2x16x32xbf16>, vector<2x16x32xf32> -> vector<2x16x32xf32>
    "tpu.trace_stop"() : () -> ()
    %3 = arith.truncf %2 : vector<2x16x32xf32> to vector<2x16x32xbf16>
    %4 = vector.shape_cast %3 : vector<2x16x32xbf16> to vector<32x32xbf16>
    %c0_5 = arith.constant 0 : index
    %c0_6 = arith.constant 0 : index
    %5 = vector.load %arg4[%c0_5, %c0_6] : memref<32x128xbf16, #tpu.memory_space<vmem>>, vector<32x128xbf16>
    %cst_7 = arith.constant dense<0.000000e+00> : vector<32x128xf32>
    %6 = tpu.matmul %4, %5, %cst_7 {dimension_numbers = #tpu.dot_dimension_numbers<[1], [0], [0], [1], [0, 0, 1, 1], [], []>} : vector<32x32xbf16>, vector<32x128xbf16>, vector<32x128xf32> -> vector<32x128xf32>
    %c0_8 = arith.constant 0 : index
    %c0_9 = arith.constant 0 : index
    %7 = vector.load %arg5[%c0_8, %c0_9] : memref<1x128xf32, #tpu.memory_space<vmem>>, vector<1x128xf32>
    %8 = vector.broadcast %7 : vector<1x128xf32> to vector<32x128xf32>
    %9 = arith.addf %6, %8 : vector<32x128xf32>
    %cst_10 = arith.constant 0.000000e+00 : f32
    %10 = vector.broadcast %cst_10 : f32 to vector<32x128xf32>
    %11 = arith.maximumf %9, %10 : vector<32x128xf32>
    %12 = vector.shape_cast %11 : vector<32x128xf32> to vector<2x16x128xf32>
    %c0_11 = arith.constant 0 : index
    %c0_12 = arith.constant 0 : index
    %c0_13 = arith.constant 0 : index
    %13 = vector.load %arg6[%c0_11, %c0_12, %c0_13] : memref<2x16x128xf32, #tpu.memory_space<vmem>>, vector<2x16x128xf32>
    tpu.vector_store %arg6[%c0_11, %c0_12, %c0_13], %12 {strides = array<i32>} : memref<2x16x128xf32, #tpu.memory_space<vmem>>, vector<2x16x128xf32>,
    return
  }
  func.func @transform_0(%arg0: i32, %arg1: i32) -> (i32, i32, i32) {
    %c0_i32 = arith.constant 0 : i32
    %c0_i32_0 = arith.constant 0 : i32
    return %arg0, %arg1, %c0_i32 : i32, i32, i32
  }
  func.func @transform_1(%arg0: i32, %arg1: i32) -> (i32, i32, i32) {
    %c0_i32 = arith.constant 0 : i32
    %c0_i32_0 = arith.constant 0 : i32
    %c0_i32_1 = arith.constant 0 : i32
    return %arg0, %c0_i32, %c0_i32_0 : i32, i32, i32
  }
  func.func @transform_2(%arg0: i32, %arg1: i32) -> (i32, i32) {
    %c0_i32 = arith.constant 0 : i32
    %c0_i32_0 = arith.constant 0 : i32
    %c0_i32_1 = arith.constant 0 : i32
    return %c0_i32, %c0_i32_0 : i32, i32
  }
  func.func @transform_3(%arg0: i32, %arg1: i32) -> (i32, i32) {
    %c0_i32 = arith.constant 0 : i32
    %c0_i32_0 = arith.constant 0 : i32
    %c0_i32_1 = arith.constant 0 : i32
    return %c0_i32, %c0_i32_0 : i32, i32
  }
  func.func @transform_4(%arg0: i32, %arg1: i32) -> (i32, i32, i32) {
    %c0_i32 = arith.constant 0 : i32
    %c0_i32_0 = arith.constant 0 : i32
    return %arg0, %arg1, %c0_i32 : i32, i32, i32
  }
}

</mosaic_0001>

<llo_original>
// kernel: tpu_custom_call.1
$region0: #{tpu_custom_call.1}
  #allocation0 [shape = 'u32[]', space=smem, size = 0x4, offset = 0x4, fixed_abs, tag = 'smem constant byte address 0x4 - core index']
  #allocation1 [shape = 'u32[144,128]{1,0:T(1,128)}', space=vmem, size = 0x12000, scoped, tag = 'internal scratch']
  %s0 = inlined_call_operand.hbm [shape: bf16[2,16,16], index: 0, kind: input, shape index: {}]
  %s1 = inlined_call_operand.hbm [shape: bf16[2,16,32], index: 1, kind: input, shape index: {}]
  %s2 = inlined_call_operand.hbm [shape: bf16[32,128], index: 2, kind: input, shape index: {}]
  %s3 = inlined_call_operand.vmem [shape: f32[1,128], index: 3, kind: input, shape index: {}]
  %s4 = inlined_call_operand.hbm [shape: f32[2,16,128], index: 4, kind: output, shape index: {}]
  %s5 = sld [smem:[#allocation0]]
  $region38: #{tpu_custom_call.1} parent=0
    _
  %s7 = ssub.s32 1, %s5
  %s8 = scalar_select 0, %s7, %s5
  $region1: #{tpu_custom_call.1} parent=0
    #allocation2 [shape = 'u8[8192]{0}', space=vmem, size = 0x2000, scoped, tag = 'input window, operand 0, single buffered']
    #allocation3 [shape = 's32[1]{0}', space=sflag, size = 0x4, scoped, tag = 'scoped memory for tpu_custom_call.1']
    #allocation4 [shape = 's32[1]{0}', space=sflag, size = 0x4, scoped, tag = 'scoped memory for tpu_custom_call.1']
    #allocation5 [shape = 'u8[8192]{0}', space=vmem, size = 0x2000, scoped, tag = 'input window, operand 1, single buffered']
    #allocation6 [shape = 's32[1]{0}', space=sflag, size = 0x4, scoped, tag = 'scoped memory for tpu_custom_call.1']
    #allocation7 [shape = 'u8[8192]{0}', space=vmem, size = 0x2000, scoped, tag = 'input window, operand 2, single buffered']
    #allocation8 [shape = 'u8[16384]{0}', space=vmem, size = 0x4000, scoped, tag = 'output window, operand 0, single buffered']
    %9 = vsyncpa [#allocation3], 0
    %10 = vsyncpa [#allocation6], 0
    %11 = vsyncpa [#allocation4], 0
    // Predicated region
    $region2: #{tpu_custom_call.1} parent=1 // pred_check
      _
    $region3: #{tpu_custom_call.1} parent=1 // pred_check_branch
      %13 = sbr.rel (0) target = $region5
    $region4: #{tpu_custom_call.1} parent=1 // pred_region
      %s15 = ssub.s32 256, 256
      %16 = vsyncadd [#allocation3], %s15
      %s17 = sshll.u32 [#allocation2], 4
      %s18 = int_to_ptr.vmem [resolvable:$true] %s17
      %23 = dma.hbm_to_vmem [thread:$0]  %s0, 256, %s18, [#allocation3], 64, 64, 4
    $region5: #{tpu_custom_call.1} parent=1 // pred_fallthru
      _
    // Predicated region
    $region6: #{tpu_custom_call.1} parent=1 // pred_check
      _
    $region7: #{tpu_custom_call.1} parent=1 // pred_check_branch
      %25 = sbr.rel (0) target = $region9
    $region8: #{tpu_custom_call.1} parent=1 // pred_region
      %s27 = ssub.s32 256, 256
      %28 = vsyncadd [#allocation6], %s27
      %s29 = sshll.u32 [#allocation5], 4
      %s30 = int_to_ptr.vmem [resolvable:$true] %s29
      %35 = dma.hbm_to_vmem [thread:$0]  %s1, 256, %s30, [#allocation6], 64, 64, 4
    $region9: #{tpu_custom_call.1} parent=1 // pred_fallthru
      _
    // Predicated region
    $region10: #{tpu_custom_call.1} parent=1 // pred_check
      _
    $region11: #{tpu_custom_call.1} parent=1 // pred_check_branch
      %37 = sbr.rel (0) target = $region13
    $region12: #{tpu_custom_call.1} parent=1 // pred_region
      %s39 = ssub.s32 256, 256
      %40 = vsyncadd [#allocation6], %s39
      %s41 = sshll.u32 [#allocation7], 4
      %s42 = int_to_ptr.vmem [resolvable:$true] %s41
      %47 = dma.hbm_to_vmem [thread:$0]  %s2, 256, %s42, [#allocation6], 64, 64, 4
    $region13: #{tpu_custom_call.1} parent=1 // pred_fallthru
      _
    // Predicated region
    $region14: #{tpu_custom_call.1} parent=1 // pred_check
      _
    $region15: #{tpu_custom_call.1} parent=1 // pred_check_branch
      %49 = sbr.rel (0) target = $region17
    $region16: #{tpu_custom_call.1} parent=1 // pred_region
      _
    $region17: #{tpu_custom_call.1} parent=1 // pred_fallthru
      _
    // Predicated region
    $region18: #{tpu_custom_call.1} parent=1 // pred_check
      _
    $region19: #{tpu_custom_call.1} parent=1 // pred_check_branch
      %51 = sbr.rel (0) target = $region21
    $region20: #{tpu_custom_call.1} parent=1 // pred_region
      %52 = dma.done [#allocation3], 256
    $region21: #{tpu_custom_call.1} parent=1 // pred_fallthru
      _
    // Predicated region
    $region22: #{tpu_custom_call.1} parent=1 // pred_check
      _
    $region23: #{tpu_custom_call.1} parent=1 // pred_check_branch
      %54 = sbr.rel (0) target = $region25
    $region24: #{tpu_custom_call.1} parent=1 // pred_region
      %55 = dma.done [#allocation6], 256
    $region25: #{tpu_custom_call.1} parent=1 // pred_fallthru
      _
    // Predicated region
    $region26: #{tpu_custom_call.1} parent=1 // pred_check
      _
    $region27: #{tpu_custom_call.1} parent=1 // pred_check_branch
      %57 = sbr.rel (0) target = $region29
    $region28: #{tpu_custom_call.1} parent=1 // pred_region
      %58 = dma.done [#allocation6], 256
    $region29: #{tpu_custom_call.1} parent=1 // pred_fallthru
      _
    %v60 = vld [vmem:[#allocation2] sm:$0xf]
    %v61 = vld [vmem:[#allocation2 + $0x4] sm:$0xf]
    %v62 = vld [vmem:[#allocation2 + $0x8] sm:$0xf]
    %v63 = vld [vmem:[#allocation2 + $0xc] sm:$0xf]
    %v64 = vld [vmem:[#allocation5] sm:$0xf]
    %v65 = vld [vmem:[#allocation5 + $0x4] sm:$0xf]
    %v66 = vld [vmem:[#allocation5 + $0x8] sm:$0xf]
    %v67 = vld [vmem:[#allocation5 + $0xc] sm:$0xf]
    %v70 = vunpack.c.l.b16 %v60
    %v71 = vunpack.c.l.b16 %v61
    %v72 = vpack.c.b16 %v71, %v70
    %v75 = vunpack.c.l.b16 %v64
    %v76 = vunpack.c.l.b16 %v65
    %v77 = vpack.c.b16 %v76, %v75
    %vm79 = vcmask 130048
    %v81 = vsel %vm79, %v72, 0
    %83 = vmatprep.subr.bf16.mxu0 0
    %84 = vmatpush1.bf16.msra.mxu0 0
    %85 = vmatprep.subr.bf16.mxu0 0
    %86 = vmatpush1.bf16.msra.mxu0 0
    %87 = vmatprep.subr.bf16.mxu0 0
    %88 = vmatpush1.bf16.msra.mxu0 0
    %89 = vmatprep.subr.bf16.mxu0 0
    %90 = vmatpush1.bf16.msra.mxu0 0
    %91 = vmatprep.subr.bf16.mxu0 0
    %92 = vmatpush1.bf16.msra.mxu0 0
    %93 = vmatprep.subr.bf16.mxu0 0
    %94 = vmatpush1.bf16.msra.mxu0 0
    %95 = vmatprep.subr.bf16.mxu0 0
    %96 = vmatpush1.bf16.msra.mxu0 0
    %97 = vmatprep.subr.bf16.mxu0 0
    %98 = vmatpush1.bf16.msra.mxu0 %v77
    %99 = vmatprep.subr.bf16.mxu0 0
    %100 = vmatpush2.bf16.msra.mxu0 0
    %101 = vmatprep.subr.bf16.mxu0 0
    %102 = vmatpush2.bf16.msra.mxu0 0
    %103 = vmatprep.subr.bf16.mxu0 0
    %104 = vmatpush2.bf16.msra.mxu0 0
    %105 = vmatprep.subr.bf16.mxu0 0
    %106 = vmatpush2.bf16.msra.mxu0 0
    %107 = vmatprep.subr.bf16.mxu0 0
    %108 = vmatpush2.bf16.msra.mxu0 0
    %109 = vmatprep.subr.bf16.mxu0 0
    %110 = vmatpush2.bf16.msra.mxu0 0
    %111 = vmatprep.subr.bf16.mxu0 0
    %112 = vmatpush2.bf16.msra.mxu0 0
    %113 = vmatprep.subr.bf16.mxu0 0
    %114 = vmatpush2.bf16.msra.mxu0 0
    %115 = vmatprep.mubr.bf16.mxu0 0
    %116 = vmatmul.mubr.bf16.gmra.mxu0 %v81
    %v117 = vpop.f32.mrf.mxu0
    %v118 = vadd.f32 0.0, %v117
    %v119 = vpop.f32.mrf.mxu0
    %v120 = vpop.f32.mrf.mxu0
    %v121 = vadd.f32 0.0, %v120
    %v122 = vpop.f32.mrf.mxu0
    %123 = vdwg.mxu0
    %v126 = vunpack.c.l.b16 %v62
    %v127 = vunpack.c.l.b16 %v63
    %v128 = vpack.c.b16 %v127, %v126
    %v131 = vunpack.c.l.b16 %v66
    %v132 = vunpack.c.l.b16 %v67
    %v133 = vpack.c.b16 %v132, %v131
    %v136 = vsel %vm79, %v128, 0
    %138 = vmatprep.subr.bf16.mxu0 0
    %139 = vmatpush1.bf16.msra.mxu0 0
    %140 = vmatprep.subr.bf16.mxu0 0
    %141 = vmatpush1.bf16.msra.mxu0 0
    %142 = vmatprep.subr.bf16.mxu0 0
    %143 = vmatpush1.bf16.msra.mxu0 0
    %144 = vmatprep.subr.bf16.mxu0 0
    %145 = vmatpush1.bf16.msra.mxu0 0
    %146 = vmatprep.subr.bf16.mxu0 0
    %147 = vmatpush1.bf16.msra.mxu0 0
    %148 = vmatprep.subr.bf16.mxu0 0
    %149 = vmatpush1.bf16.msra.mxu0 0
    %150 = vmatprep.subr.bf16.mxu0 0
    %151 = vmatpush1.bf16.msra.mxu0 0
    %152 = vmatprep.subr.bf16.mxu0 0
    %153 = vmatpush1.bf16.msra.mxu0 %v133
    %154 = vmatprep.subr.bf16.mxu0 0
    %155 = vmatpush2.bf16.msra.mxu0 0
    %156 = vmatprep.subr.bf16.mxu0 0
    %157 = vmatpush2.bf16.msra.mxu0 0
    %158 = vmatprep.subr.bf16.mxu0 0
    %159 = vmatpush2.bf16.msra.mxu0 0
    %160 = vmatprep.subr.bf16.mxu0 0
    %161 = vmatpush2.bf16.msra.mxu0 0
    %162 = vmatprep.subr.bf16.mxu0 0
    %163 = vmatpush2.bf16.msra.mxu0 0
    %164 = vmatprep.subr.bf16.mxu0 0
    %165 = vmatpush2.bf16.msra.mxu0 0
    %166 = vmatprep.subr.bf16.mxu0 0
    %167 = vmatpush2.bf16.msra.mxu0 0
    %168 = vmatprep.subr.bf16.mxu0 0
    %169 = vmatpush2.bf16.msra.mxu0 0
    %170 = vmatprep.mubr.bf16.mxu0 0
    %171 = vmatmul.mubr.bf16.gmra.mxu0 %v136
    %v172 = vpop.f32.mrf.mxu0
    %v173 = vadd.f32 0.0, %v172
    %v174 = vpop.f32.mrf.mxu0
    %v175 = vpop.f32.mrf.mxu0
    %v176 = vadd.f32 0.0, %v175
    %v177 = vpop.f32.mrf.mxu0
    %178 = vdwg.mxu0
    %v179 = vpack.c.bf16 %v121, %v118
    %v180 = vpack.c.bf16 %v176, %v173
    %v181 = vld [vmem:[#allocation7] sm:$0xf]
    %v182 = vld [vmem:[#allocation7 + $0x4] sm:$0xf]
    %v183 = vld [vmem:[#allocation7 + $0x8] sm:$0xf]
    %v184 = vld [vmem:[#allocation7 + $0xc] sm:$0xf]
    %v185 = vld [vmem:[%s3] sm:$0x1]
    %v187 = vlaneseq
    %v188 = vshrl.u32 %v187, 7
    %v189 = vsub.s32 0, %v188
    %v190 = vrot.slane %v185, %v189
    %v196 = vunpack.c.l.b16 %v181
    %v197 = vunpack.c.l.b16 %v182
    %v198 = vunpack.c.l.b16 %v183
    %v199 = vunpack.c.l.b16 %v184
    %v200 = vpack.c.b16 %v197, %v196
    %v201 = vpack.c.b16 %v199, %v198
    %vm204 = vcmask 261120
    %v206 = vsel %vm204, %v179, 0
    %v209 = vsel %vm204, %v180, 0
    %211 = vmatprep.subr.bf16.mxu0 0
    %212 = vmatpush1.bf16.msra.mxu0 0
    %213 = vmatprep.subr.bf16.mxu0 0
    %214 = vmatpush1.bf16.msra.mxu0 0
    %215 = vmatprep.subr.bf16.mxu0 0
    %216 = vmatpush1.bf16.msra.mxu0 0
    %217 = vmatprep.subr.bf16.mxu0 0
    %218 = vmatpush1.bf16.msra.mxu0 0
    %219 = vmatprep.subr.bf16.mxu0 0
    %220 = vmatpush1.bf16.msra.mxu0 0
    %221 = vmatprep.subr.bf16.mxu0 0
    %222 = vmatpush1.bf16.msra.mxu0 0
    %223 = vmatprep.subr.bf16.mxu0 0
    %224 = vmatpush1.bf16.msra.mxu0 %v201
    %225 = vmatprep.subr.bf16.mxu0 0
    %226 = vmatpush1.bf16.msra.mxu0 %v200
    %227 = vmatprep.subr.bf16.mxu0 0
    %228 = vmatpush2.bf16.msra.mxu0 0
    %229 = vmatprep.subr.bf16.mxu0 0
    %230 = vmatpush2.bf16.msra.mxu0 0
    %231 = vmatprep.subr.bf16.mxu0 0
    %232 = vmatpush2.bf16.msra.mxu0 0
    %233 = vmatprep.subr.bf16.mxu0 0
    %234 = vmatpush2.bf16.msra.mxu0 0
    %235 = vmatprep.subr.bf16.mxu0 0
    %236 = vmatpush2.bf16.msra.mxu0 0
    %237 = vmatprep.subr.bf16.mxu0 0
    %238 = vmatpush2.bf16.msra.mxu0 0
    %239 = vmatprep.subr.bf16.mxu0 0
    %240 = vmatpush2.bf16.msra.mxu0 0
    %241 = vmatprep.subr.bf16.mxu0 0
    %242 = vmatpush2.bf16.msra.mxu0 0
    %243 = vmatprep.mubr.bf16.mxu0 0
    %244 = vmatmul.mubr.bf16.gmra.mxu0 %v206
    %v245 = vpop.f32.mrf.mxu0
    %v246 = vadd.f32 %v190, %v245
    %v247 = vpop.f32.mrf.mxu0
    %v248 = vpop.f32.mrf.mxu0
    %v249 = vadd.f32 %v190, %v248
    %v250 = vpop.f32.mrf.mxu0
    %251 = vmatprep.mubr.bf16.mxu0 0
    %252 = vmatmul.mubr.bf16.gmra.mxu0 %v209
    %v253 = vpop.f32.mrf.mxu0
    %v254 = vadd.f32 %v190, %v253
    %v255 = vpop.f32.mrf.mxu0
    %v256 = vpop.f32.mrf.mxu0
    %v257 = vadd.f32 %v190, %v256
    %v258 = vpop.f32.mrf.mxu0
    %259 = vdwg.mxu0
    %v260 = vmax.f32 %v246, 0.0
    %v261 = vmax.f32 %v249, 0.0
    %v262 = vmax.f32 %v254, 0.0
    %v263 = vmax.f32 %v257, 0.0
    %264 = vst [vmem:[#allocation8] sm:$0xff] %v260
    %265 = vst [vmem:[#allocation8 + $0x8] sm:$0xff] %v261
    %266 = vst [vmem:[#allocation8 + $0x10] sm:$0xff] %v262
    %267 = vst [vmem:[#allocation8 + $0x18] sm:$0xff] %v263
    // Predicated region
    $region30: #{tpu_custom_call.1} parent=1 // pred_check
      _
    $region31: #{tpu_custom_call.1} parent=1 // pred_check_branch
      %269 = sbr.rel (0) target = $region33
    $region32: #{tpu_custom_call.1} parent=1 // pred_region
      %s271 = ssub.s32 512, 512
      %272 = vsyncadd [#allocation4], %s271
      %s273 = sshll.u32 [#allocation8], 4
      %s274 = int_to_ptr.vmem [resolvable:$true] %s273
      %279 = dma.vmem_to_hbm [thread:$0]  %s274, 512, %s4, [#allocation4], 128, 128, 8
    $region33: #{tpu_custom_call.1} parent=1 // pred_fallthru
      _
    // Predicated region
    $region34: #{tpu_custom_call.1} parent=1 // pred_check
      _
    $region35: #{tpu_custom_call.1} parent=1 // pred_check_branch
      %281 = sbr.rel (0) target = $region37
    $region36: #{tpu_custom_call.1} parent=1 // pred_region
      %282 = dma.done [#allocation4], 512
    $region37: #{tpu_custom_call.1} parent=1 // pred_fallthru
      _
    %283 = vsyncpa [#allocation3], 1
    %284 = vsyncpa [#allocation6], 1
    %285 = vsyncpa [#allocation4], 1

</llo_original>
